<compile_context>
chip_gen: v7x
topology: tpu7x:2x2x1
jax: 0.10.0
libtpu: 0.0.40
codegen_flags: <defaults>
</compile_context>

<pallas_src>
import functools

import jax
import jax.numpy as jnp
from jax.experimental import pallas as pl
from jax.experimental.pallas import tpu as pltpu


def _round_up(x, m):
    return ((x + m - 1) // m) * m


def _pick_tile(padded, unit, cap):
    """Largest multiple of `unit` that divides `padded` and is <= max(cap, unit)."""
    assert padded % unit == 0
    if padded <= cap:
        return padded
    blocks = padded // unit
    best = 1
    for d in range(2, blocks):
        if blocks % d == 0 and unit * d <= cap:
            best = d
    return unit * best


def _apply_activation(y, activation):
    if activation is None:
        return y
    if isinstance(activation, str):
        if activation == "tanh":
            return jnp.tanh(y)
        if activation == "relu":
            return jnp.maximum(y, 0.0)
        if activation == "sigmoid":
            return jax.nn.sigmoid(y)
        raise ValueError(f"unsupported activation: {activation!r}")
    if callable(activation):
        return activation(y)
    raise ValueError(f"unsupported activation: {activation!r}")


# ---------------------------------------------------------------------------
# Kernels
# ---------------------------------------------------------------------------

def _linear_kernel_single_k(x_ref, w_ref, b_ref, o_ref, *, activation):
    # Whole K fits in one step: no accumulator scratch, write the epilogue directly.
    y = jnp.dot(x_ref[...], w_ref[...], preferred_element_type=jnp.float32)
    y = y + b_ref[...].astype(jnp.float32)           # (tm, tn) + (1, tn) broadcast
    y = _apply_activation(y, activation)
    o_ref[...] = y.astype(o_ref.dtype)


def _linear_kernel_multi_k(x_ref, w_ref, b_ref, o_ref, acc_ref, *, activation):
    k = pl.program_id(2)
    prod = jnp.dot(x_ref[...], w_ref[...], preferred_element_type=jnp.float32)

    @pl.when(k == 0)
    def _():
        acc_ref[...] = prod            # first partial product (no zero-init round trip)

    @pl.when(k > 0)
    def _():
        acc_ref[...] += prod

    @pl.when(k == pl.num_programs(2) - 1)
    def _():
        y = acc_ref[...] + b_ref[...].astype(jnp.float32)
        y = _apply_activation(y, activation)
        o_ref[...] = y.astype(o_ref.dtype)


# ---------------------------------------------------------------------------
# Forward wrapper
# ---------------------------------------------------------------------------

def _linear_forward(x, wt_p, b2d_p, n_out, activation, compute_dtype, out_dtype):
    """x: (B, n_in); wt_p: (Kp, Np) pre-transposed+padded W; b2d_p: (1, Np) f32."""
    B, n_in = x.shape
    Kp, Np = wt_p.shape

    # Sublane packing: bf16 packs 16 rows per vreg sublane group.
    m_unit = 8 if jnp.dtype(compute_dtype).itemsize >= 4 else 16
    tm = min(512, _round_up(B, m_unit))
    Mp = _round_up(B, tm)

    tk = _pick_tile(Kp, 128, 1024)
    tn = _pick_tile(Np, 128, 512)
    # Guarantee >=2 tiles on a "parallel" axis where possible so both TensorCores
    # on v7x get work (no effect on single-TC v5e/v6e beyond a couple grid steps).
    if Mp // tm == 1 and Np // tn == 1 and Np >= 256:
        tn = _pick_tile(Np, 128, Np // 2)

    grid_m, grid_n, grid_k = Mp // tm, Np // tn, Kp // tk

    # Pad x only when needed: rows up to Mp (discarded at the end), K zero-padded
    # to Kp so padded columns contribute zeros to the reduction.
    if (Mp, Kp) != (B, n_in):
        x = jnp.pad(x, ((0, Mp - B), (0, Kp - n_in)))
    if x.dtype != compute_dtype:
        x = x.astype(compute_dtype)

    vmem_limit = 32 * 1024 * 1024  # safe on v5e (128 MiB), v6e (128 MiB), v7x (64 MiB)

    if grid_k == 1:
        out = pl.pallas_call(
            functools.partial(_linear_kernel_single_k, activation=activation),
            out_shape=jax.ShapeDtypeStruct((Mp, Np), out_dtype),
            grid_spec=pltpu.PrefetchScalarGridSpec(
                num_scalar_prefetch=0,
                grid=(grid_m, grid_n),
                in_specs=[
                    pl.BlockSpec((tm, Kp), lambda i, j: (i, 0)),   # x tile
                    pl.BlockSpec((Kp, tn), lambda i, j: (0, j)),   # W^T tile
                    pl.BlockSpec((1, tn), lambda i, j: (0, j)),    # bias tile
                ],
                out_specs=pl.BlockSpec((tm, tn), lambda i, j: (i, j)),
            ),
            compiler_params=pltpu.CompilerParams(
                dimension_semantics=("parallel", "parallel"),
                vmem_limit_bytes=vmem_limit,
            ),
        )(x, wt_p, b2d_p)
    else:
        out = pl.pallas_call(
            functools.partial(_linear_kernel_multi_k, activation=activation),
            out_shape=jax.ShapeDtypeStruct((Mp, Np), out_dtype),
            grid_spec=pltpu.PrefetchScalarGridSpec(
                num_scalar_prefetch=0,
                grid=(grid_m, grid_n, grid_k),
                in_specs=[
                    pl.BlockSpec((tm, tk), lambda i, j, k: (i, k)),   # x tile
                    pl.BlockSpec((tk, tn), lambda i, j, k: (k, j)),   # W^T tile
                    pl.BlockSpec((1, tn), lambda i, j, k: (0, j)),    # bias tile
                ],
                out_specs=pl.BlockSpec((tm, tn), lambda i, j, k: (i, j)),
                scratch_shapes=[pltpu.VMEM((tm, tn), jnp.float32)],
            ),
            compiler_params=pltpu.CompilerParams(
                dimension_semantics=("parallel", "parallel", "arbitrary"),
                vmem_limit_bytes=vmem_limit,
            ),
        )(x, wt_p, b2d_p)

    if (Mp, Np) != (B, n_out):
        out = out[:B, :n_out]
    return out


class PallasLinearLayer:
    """Pallas equivalent of the PyTorch `layer` module: activation(x @ W^T + b).

    Weight transpose / padding / dtype cast are done ONCE at construction
    (hoisted out of the per-call path, analogous to parameter load time).
    """

    def __init__(self, weight, bias, activation="tanh", compute_dtype=None):
        weight = jnp.asarray(weight)
        bias = jnp.asarray(bias)
        self.n_out, self.n_in = weight.shape
        assert bias.shape == (self.n_out,)
        # Validate the activation spec early on a tiny array.
        _apply_activation(jnp.zeros((1, 1), jnp.float32), activation)
        self.activation = activation
        self.compute_dtype = jnp.dtype(compute_dtype) if compute_dtype else weight.dtype

        Kp = _round_up(self.n_in, 128)
        Np = _round_up(self.n_out, 128)
        wt = weight.T                                        # (n_in, n_out)
        if (Kp, Np) != (self.n_in, self.n_out):
            wt = jnp.pad(wt, ((0, Kp - self.n_in), (0, Np - self.n_out)))
        self.wt = wt.astype(self.compute_dtype)              # (Kp, Np), hoisted cast
        b2d = bias.astype(jnp.float32).reshape(1, self.n_out)
        if Np != self.n_out:
            b2d = jnp.pad(b2d, ((0, 0), (0, Np - self.n_out)))
        self.b2d = b2d                                        # (1, Np) f32

    def __call__(self, x):
        x = jnp.asarray(x)
        lead = x.shape[:-1]
        assert x.shape[-1] == self.n_in
        x2 = x.reshape(-1, self.n_in)
        y = _linear_forward(x2, self.wt, self.b2d, self.n_out,
                            self.activation, self.compute_dtype, x.dtype)
        return y.reshape(*lead, self.n_out)


def linear_layer(x, weight, bias, activation="tanh", compute_dtype=None):
    """Functional drop-in: activation(x @ W^T + b). Prefer PallasLinearLayer so the
    weight transpose/pad/cast is hoisted out of the per-call path."""
    return PallasLinearLayer(weight, bias, activation, compute_dtype)(x)


# ---------------------------------------------------------------------------
# Demo / correctness check
# ---------------------------------------------------------------------------

def _ref(x, weight, bias, activation):
    y = x @ weight.T + bias
    return _apply_activation(y, activation)


if __name__ == "__main__":
    key = jax.random.PRNGKey(0)

    # --- small PINN-style shapes matching the original module ---
    n_in, n_out, batch = 32, 16, 8
    k_x, k_w, k_b, k2 = jax.random.split(key, 4)
    bound = 1.0 / jnp.sqrt(float(n_in))
    x = jax.random.normal(k_x, (batch, n_in), dtype=jnp.float32)
    weight = jax.random.uniform(k_w, (n_out, n_in), minval=-bound, maxval=bound,
                                dtype=jnp.float32)
    bias = jax.random.uniform(k_b, (n_out,), minval=-bound, maxval=bound,
                              dtype=jnp.float32)

    lyr = PallasLinearLayer(weight, bias, activation="tanh")
    out = jax.block_until_ready(lyr(x))
    assert out.shape == (batch, n_out)
    assert jnp.allclose(out, _ref(x, weight, bias, "tanh"), atol=1e-5, rtol=1e-5)

    # identity-activation branch (activation=None in the PyTorch module)
    lyr_id = PallasLinearLayer(weight, bias, activation=None)
    out_id = jax.block_until_ready(lyr_id(x))
    assert jnp.allclose(out_id, _ref(x, weight, bias, None), atol=1e-5, rtol=1e-5)

    # --- larger shapes exercising the multi-tile grid and divisor tiling ---
    B2, K2, N2 = 512, 640, 384
    k_x2, k_w2, k_b2 = jax.random.split(k2, 3)
    bound2 = 1.0 / jnp.sqrt(float(K2))
    x2 = jax.random.normal(k_x2, (B2, K2), dtype=jnp.float32)
    w2 = jax.random.uniform(k_w2, (N2, K2), minval=-bound2, maxval=bound2,
                            dtype=jnp.float32)
    b2 = jax.random.uniform(k_b2, (N2,), minval=-bound2, maxval=bound2,
                            dtype=jnp.float32)

    lyr2 = PallasLinearLayer(w2, b2, activation="tanh")
    out2 = jax.block_until_ready(lyr2(x2))
    ref2 = _ref(x2, w2, b2, "tanh")
    assert out2.shape == (B2, N2)
    assert jnp.allclose(out2, ref2, atol=1e-4, rtol=1e-4)

    # --- optional bf16 compute path (f32 accumulate + f32 epilogue) ---
    lyr2_bf16 = PallasLinearLayer(w2, b2, activation="tanh",
                                  compute_dtype=jnp.bfloat16)
    out2_bf16 = jax.block_until_ready(lyr2_bf16(x2))
    assert out2_bf16.shape == (B2, N2)
    assert jnp.allclose(out2_bf16, ref2, atol=3e-2, rtol=3e-2)

    print("KERNEL_OK")
</pallas_src>

<mosaic_0001>
module attributes {stable_mosaic.version = 11 : i64} {
  func.func @_linear_kernel_single_k(%arg0: i32, %arg1: i32, %arg2: memref<8x128xf32, #tpu.memory_space<vmem>>, %arg3: memref<128x128xf32, #tpu.memory_space<vmem>>, %arg4: memref<1x128xf32, #tpu.memory_space<vmem>>, %arg5: memref<8x128xf32, #tpu.memory_space<vmem>>) attributes {dimension_semantics = [#tpu.dimension_semantics<parallel>, #tpu.dimension_semantics<parallel>], iteration_bounds = array<i64: 1, 1>, scalar_prefetch = 0 : i64, scratch_operands = 0 : i64, tpu.core_type = #tpu.core_type<tc>, window_params = [{transform_indices = @transform_0, window_bounds = array<i64: 8, 128>}, {transform_indices = @transform_1, window_bounds = array<i64: 128, 128>}, {transform_indices = @transform_2, window_bounds = array<i64: 1, 128>}, {transform_indices = @transform_3, window_bounds = array<i64: 8, 128>}]} {
    %c0 = arith.constant 0 : index
    %c0_0 = arith.constant 0 : index
    %0 = vector.load %arg2[%c0, %c0_0] : memref<8x128xf32, #tpu.memory_space<vmem>>, vector<8x128xf32>
    %c0_1 = arith.constant 0 : index
    %c0_2 = arith.constant 0 : index
    %1 = vector.load %arg3[%c0_1, %c0_2] : memref<128x128xf32, #tpu.memory_space<vmem>>, vector<128x128xf32>
    %cst = arith.constant dense<0.000000e+00> : vector<8x128xf32>
    %2 = tpu.matmul %0, %1, %cst {dimension_numbers = #tpu.dot_dimension_numbers<[1], [0], [0], [1], [0, 0, 1, 1], [], []>} : vector<8x128xf32>, vector<128x128xf32>, vector<8x128xf32> -> vector<8x128xf32>
    %c0_3 = arith.constant 0 : index
    %c0_4 = arith.constant 0 : index
    %3 = vector.load %arg4[%c0_3, %c0_4] : memref<1x128xf32, #tpu.memory_space<vmem>>, vector<1x128xf32>
    %4 = vector.broadcast %3 : vector<1x128xf32> to vector<8x128xf32>
    %5 = arith.addf %2, %4 : vector<8x128xf32>
    %6 = math.tanh %5 : vector<8x128xf32>
    %c0_5 = arith.constant 0 : index
    %c0_6 = arith.constant 0 : index
    %7 = vector.load %arg5[%c0_5, %c0_6] : memref<8x128xf32, #tpu.memory_space<vmem>>, vector<8x128xf32>
    tpu.vector_store %arg5[%c0_5, %c0_6], %6 {strides = array<i32>} : memref<8x128xf32, #tpu.memory_space<vmem>>, vector<8x128xf32>,
    return
  }
  func.func @transform_0(%arg0: i32, %arg1: i32) -> (i32, i32) {
    %c0_i32 = arith.constant 0 : i32
    %c0_i32_0 = arith.constant 0 : i32
    return %arg0, %c0_i32 : i32, i32
  }
  func.func @transform_1(%arg0: i32, %arg1: i32) -> (i32, i32) {
    %c0_i32 = arith.constant 0 : i32
    %c0_i32_0 = arith.constant 0 : i32
    return %c0_i32, %arg1 : i32, i32
  }
  func.func @transform_2(%arg0: i32, %arg1: i32) -> (i32, i32) {
    %c0_i32 = arith.constant 0 : i32
    %c0_i32_0 = arith.constant 0 : i32
    return %c0_i32, %arg1 : i32, i32
  }
  func.func @transform_3(%arg0: i32, %arg1: i32) -> (i32, i32) {
    %c0_i32 = arith.constant 0 : i32
    return %arg0, %arg1 : i32, i32
  }
}

</mosaic_0001>

<llo_original>
// kernel: tpu_custom_call.1
$region0: #{tpu_custom_call.1}
  #allocation0 [shape = 'u32[]', space=smem, size = 0x4, offset = 0x4, fixed_abs, tag = 'smem constant byte address 0x4 - core index']
  #allocation1 [shape = 'u32[144,128]{1,0:T(1,128)}', space=vmem, size = 0x12000, scoped, tag = 'internal scratch']
  %s0 = inlined_call_operand.hbm [shape: f32[8,128], index: 0, kind: input, shape index: {}]
  %s1 = inlined_call_operand.hbm [shape: f32[128,128], index: 1, kind: input, shape index: {}]
  %s2 = inlined_call_operand.vmem [shape: f32[1,128], index: 2, kind: input, shape index: {}]
  %s3 = inlined_call_operand.hbm [shape: f32[8,128], index: 3, kind: output, shape index: {}]
  %s4 = sld [smem:[#allocation0]]
  $region30: #{tpu_custom_call.1} parent=0
    _
  %s6 = ssub.s32 1, %s4
  %s7 = scalar_select 0, %s6, %s4
  $region1: #{tpu_custom_call.1} parent=0
    #allocation2 [shape = 'u8[4096]{0}', space=vmem, size = 0x1000, scoped, tag = 'input window, operand 0, single buffered']
    #allocation3 [shape = 's32[1]{0}', space=sflag, size = 0x4, scoped, tag = 'scoped memory for tpu_custom_call.1']
    #allocation4 [shape = 's32[1]{0}', space=sflag, size = 0x4, scoped, tag = 'scoped memory for tpu_custom_call.1']
    #allocation5 [shape = 'u8[65536]{0}', space=vmem, size = 0x10000, scoped, tag = 'input window, operand 1, single buffered']
    #allocation6 [shape = 's32[1]{0}', space=sflag, size = 0x4, scoped, tag = 'scoped memory for tpu_custom_call.1']
    #allocation7 [shape = 'u8[4096]{0}', space=vmem, size = 0x1000, scoped, tag = 'output window, operand 0, single buffered']
    %8 = vsyncpa [#allocation3], 0
    %9 = vsyncpa [#allocation6], 0
    %10 = vsyncpa [#allocation4], 0
    // Predicated region
    $region2: #{tpu_custom_call.1} parent=1 // pred_check
      _
    $region3: #{tpu_custom_call.1} parent=1 // pred_check_branch
      %12 = sbr.rel (0) target = $region5
    $region4: #{tpu_custom_call.1} parent=1 // pred_region
      %s14 = ssub.s32 128, 128
      %15 = vsyncadd [#allocation3], %s14
      %s17 = sshll.u32 [#allocation2], 4
      %s18 = int_to_ptr.vmem [resolvable:$true] %s17
      %20 = dma.hbm_to_vmem [thread:$0]  %s0, 128, %s18, [#allocation3]
    $region5: #{tpu_custom_call.1} parent=1 // pred_fallthru
      _
    // Predicated region
    $region6: #{tpu_custom_call.1} parent=1 // pred_check
      _
    $region7: #{tpu_custom_call.1} parent=1 // pred_check_branch
      %22 = sbr.rel (0) target = $region9
    $region8: #{tpu_custom_call.1} parent=1 // pred_region
      %s24 = ssub.s32 2048, 2048
      %25 = vsyncadd [#allocation6], %s24
      %s26 = sshll.u32 [#allocation5], 4
      %s27 = int_to_ptr.vmem [resolvable:$true] %s26
      %32 = dma.hbm_to_vmem [thread:$0]  %s1, 2048, %s27, [#allocation6], 128, 128, 8
    $region9: #{tpu_custom_call.1} parent=1 // pred_fallthru
      _
    // Predicated region
    $region10: #{tpu_custom_call.1} parent=1 // pred_check
      _
    $region11: #{tpu_custom_call.1} parent=1 // pred_check_branch
      %34 = sbr.rel (0) target = $region13
    $region12: #{tpu_custom_call.1} parent=1 // pred_region
      _
    $region13: #{tpu_custom_call.1} parent=1 // pred_fallthru
      _
    // Predicated region
    $region14: #{tpu_custom_call.1} parent=1 // pred_check
      _
    $region15: #{tpu_custom_call.1} parent=1 // pred_check_branch
      %36 = sbr.rel (0) target = $region17
    $region16: #{tpu_custom_call.1} parent=1 // pred_region
      %37 = dma.done [#allocation3], 128
    $region17: #{tpu_custom_call.1} parent=1 // pred_fallthru
      _
    // Predicated region
    $region18: #{tpu_custom_call.1} parent=1 // pred_check
      _
    $region19: #{tpu_custom_call.1} parent=1 // pred_check_branch
      %39 = sbr.rel (0) target = $region21
    $region20: #{tpu_custom_call.1} parent=1 // pred_region
      %40 = dma.done [#allocation6], 2048
    $region21: #{tpu_custom_call.1} parent=1 // pred_fallthru
      _
    %v41 = vld [vmem:[#allocation2] sm:$0xff]
    %v42 = vld [vmem:[#allocation5] sm:$0xff]
    %v43 = vld [vmem:[#allocation5 + $0x8] sm:$0xff]
    %v44 = vld [vmem:[#allocation5 + $0x10] sm:$0xff]
    %v45 = vld [vmem:[#allocation5 + $0x18] sm:$0xff]
    %v46 = vld [vmem:[#allocation5 + $0x20] sm:$0xff]
    %v47 = vld [vmem:[#allocation5 + $0x28] sm:$0xff]
    %v48 = vld [vmem:[#allocation5 + $0x30] sm:$0xff]
    %v49 = vld [vmem:[#allocation5 + $0x38] sm:$0xff]
    %v50 = vld [vmem:[#allocation5 + $0x40] sm:$0xff]
    %v51 = vld [vmem:[#allocation5 + $0x48] sm:$0xff]
    %v52 = vld [vmem:[#allocation5 + $0x50] sm:$0xff]
    %v53 = vld [vmem:[#allocation5 + $0x58] sm:$0xff]
    %v54 = vld [vmem:[#allocation5 + $0x60] sm:$0xff]
    %v55 = vld [vmem:[#allocation5 + $0x68] sm:$0xff]
    %v56 = vld [vmem:[#allocation5 + $0x70] sm:$0xff]
    %v57 = vld [vmem:[#allocation5 + $0x78] sm:$0xff]
    %v58 = vld [vmem:[%s2] sm:$0x1]
    %v60 = vlaneseq
    %v61 = vshrl.u32 %v60, 7
    %v62 = vsub.s32 0, %v61
    %v63 = vrot.slane %v58, %v62
    %65 = vmatprep.subr.mxu0 0.0
    %66 = vmatpush1.msra.mxu0 %v42
    %67 = vmatprep.subr.mxu0 0.0
    %68 = vmatpush1.msra.mxu0 %v43
    %69 = vmatprep.subr.mxu0 0.0
    %70 = vmatpush1.msra.mxu0 %v44
    %71 = vmatprep.subr.mxu0 0.0
    %72 = vmatpush1.msra.mxu0 %v45
    %73 = vmatprep.subr.mxu0 0.0
    %74 = vmatpush1.msra.mxu0 %v46
    %75 = vmatprep.subr.mxu0 0.0
    %76 = vmatpush1.msra.mxu0 %v47
    %77 = vmatprep.subr.mxu0 0.0
    %78 = vmatpush1.msra.mxu0 %v48
    %79 = vmatprep.subr.mxu0 0.0
    %80 = vmatpush1.msra.mxu0 %v49
    %81 = vmatprep.subr.mxu0 0.0
    %82 = vmatpush1.msra.mxu0 %v50
    %83 = vmatprep.subr.mxu0 0.0
    %84 = vmatpush1.msra.mxu0 %v51
    %85 = vmatprep.subr.mxu0 0.0
    %86 = vmatpush1.msra.mxu0 %v52
    %87 = vmatprep.subr.mxu0 0.0
    %88 = vmatpush1.msra.mxu0 %v53
    %89 = vmatprep.subr.mxu0 0.0
    %90 = vmatpush1.msra.mxu0 %v54
    %91 = vmatprep.subr.mxu0 0.0
    %92 = vmatpush1.msra.mxu0 %v55
    %93 = vmatprep.subr.mxu0 0.0
    %94 = vmatpush1.msra.mxu0 %v56
    %95 = vmatprep.subr.mxu0 0.0
    %96 = vmatpush1.msra.mxu0 %v57
    %97 = vmatprep.subr.mxu0 0.0
    %98 = vmatpush1.msra.mxu0 0.0
    %99 = vmatprep.subr.mxu0 0.0
    %100 = vmatpush1.msra.mxu0 0.0
    %101 = vmatprep.subr.mxu0 0.0
    %102 = vmatpush1.msra.mxu0 0.0
    %103 = vmatprep.subr.mxu0 0.0
    %104 = vmatpush1.msra.mxu0 0.0
    %105 = vmatprep.subr.mxu0 0.0
    %106 = vmatpush1.msra.mxu0 0.0
    %107 = vmatprep.subr.mxu0 0.0
    %108 = vmatpush1.msra.mxu0 0.0
    %109 = vmatprep.subr.mxu0 0.0
    %110 = vmatpush1.msra.mxu0 0.0
    %111 = vmatprep.subr.mxu0 0.0
    %112 = vmatpush1.msra.mxu0 0.0
    %113 = vmatprep.subr.mxu0 0.0
    %114 = vmatpush1.msra.mxu0 0.0
    %115 = vmatprep.subr.mxu0 0.0
    %116 = vmatpush1.msra.mxu0 0.0
    %117 = vmatprep.subr.mxu0 0.0
    %118 = vmatpush1.msra.mxu0 0.0
    %119 = vmatprep.subr.mxu0 0.0
    %120 = vmatpush1.msra.mxu0 0.0
    %121 = vmatprep.subr.mxu0 0.0
    %122 = vmatpush1.msra.mxu0 0.0
    %123 = vmatprep.subr.mxu0 0.0
    %124 = vmatpush1.msra.mxu0 0.0
    %125 = vmatprep.subr.mxu0 0.0
    %126 = vmatpush1.msra.mxu0 0.0
    %127 = vmatprep.subr.mxu0 0.0
    %128 = vmatpush1.msra.mxu0 0.0
    %129 = vmatprep.mubr.f32.mxu0 0.0
    %130 = vmatmul.mubr.f32.gmra.mrb[0].mxu0 %v41
    %v131 = vpop.f32.mrb[0].mxu0
    %v132 = vadd.f32 %v63, %v131
    %v133 = vpop.f32.mrb[0].mxu0
    %134 = vdwg.mxu0
    %v135 = vtanh.pop %v132
    %136 = vst [vmem:[#allocation7] sm:$0xff] %v135
    // Predicated region
    $region22: #{tpu_custom_call.1} parent=1 // pred_check
      _
    $region23: #{tpu_custom_call.1} parent=1 // pred_check_branch
      %138 = sbr.rel (0) target = $region25
    $region24: #{tpu_custom_call.1} parent=1 // pred_region
      %s140 = ssub.s32 128, 128
      %141 = vsyncadd [#allocation4], %s140
      %s143 = sshll.u32 [#allocation7], 4
      %s144 = int_to_ptr.vmem [resolvable:$true] %s143
      %146 = dma.vmem_to_hbm [thread:$0]  %s144, 128, %s3, [#allocation4]
    $region25: #{tpu_custom_call.1} parent=1 // pred_fallthru
      _
    // Predicated region
    $region26: #{tpu_custom_call.1} parent=1 // pred_check
      _
    $region27: #{tpu_custom_call.1} parent=1 // pred_check_branch
      %148 = sbr.rel (0) target = $region29
    $region28: #{tpu_custom_call.1} parent=1 // pred_region
      %149 = dma.done [#allocation4], 128
    $region29: #{tpu_custom_call.1} parent=1 // pred_fallthru
      _
    %150 = vsyncpa [#allocation3], 1
    %151 = vsyncpa [#allocation6], 1
    %152 = vsyncpa [#allocation4], 1

</llo_original>
